<compile_context>
chip_gen: v5e
topology: v5e:2x2
jax: 0.10.0
libtpu: 0.0.40
codegen_flags: <defaults>
</compile_context>

<pallas_src>
import numpy as np
import jax
import jax.numpy as jnp
from jax.experimental import pallas as pl
from jax.experimental.pallas import tpu as pltpu


def _copy_kernel(x_ref, o_ref):
    # Pure elementwise copy of the current VMEM tile.
    o_ref[...] = x_ref[...]


_SMALL_BYTES = 4 << 20         # single-block fast path threshold
_TARGET_TILE_BYTES = 4 << 20   # ~4 MiB tiles -> 16 MiB in flight (in+out, 2x buf)
_VMEM_LIMIT_BYTES = 32 << 20   # safe on v5e (raises 16 MiB default) and v7x (64 MiB phys)


def _sublane_multiple(dtype) -> int:
    # f32 packs 8 rows / vreg, bf16 16, int8/fp8 32.
    itemsize = jnp.dtype(dtype).itemsize
    return max(8, 8 * (4 // max(itemsize, 1)))


def _lane_dense_view(total: int):
    # Widest multiple-of-128 lane width that exactly divides the element count.
    for c in (2048, 1024, 512, 256, 128):
        if total % c == 0:
            return total // c, c
    return None


def identity_pallas(obs: jax.Array) -> jax.Array:
    """Identity forward (Lambda(fn=identity)) as a lane-dense Pallas copy.

    Note: the cheapest correct implementation is `return obs`. Callers that
    want the aliasing to be a true in-place no-copy should donate `obs`
    (e.g. jax.jit(identity_pallas, donate_argnums=0)).
    """
    orig_shape = obs.shape
    orig_dtype = obs.dtype
    total = int(np.prod(orig_shape)) if obs.ndim > 0 else 1
    itemsize = jnp.dtype(orig_dtype).itemsize
    total_bytes = total * itemsize

    # ---- lane-dense 2D view (last dim = big multiple of 128 when possible) --
    rc = _lane_dense_view(total)
    if rc is None:
        # Element count not divisible by 128: single full-extent block.
        # TODO(synk): pad-and-slice path for huge odd-sized inputs.
        rc = (1, total)
    R, C = rc
    x2d = obs.reshape(R, C)

    if total_bytes <= _SMALL_BYTES or rc == (1, total):
        # Small-array fast path: one grid step, full-array block.
        grid = (1,)
        in_spec = pl.BlockSpec((R, C), lambda i: (0, 0))
        out_spec = pl.BlockSpec((R, C), lambda i: (0, 0))
        dim_sem = ("arbitrary",)
    else:
        # Tiled path: full lane width per block, multi-MiB row tiles.
        sub = _sublane_multiple(orig_dtype)
        row_bytes = C * itemsize
        tr = max(sub, (_TARGET_TILE_BYTES // row_bytes) // sub * sub)
        tr = min(tr, R)
        if tr == R and R > sub:
            # Keep >= 2 row blocks so the parallel axis spans both v7x cores.
            tr = max(sub, (R // 2) // sub * sub)
        grid = (pl.cdiv(R, tr),)
        in_spec = pl.BlockSpec((tr, C), lambda i: (i, 0))
        out_spec = pl.BlockSpec((tr, C), lambda i: (i, 0))
        dim_sem = ("parallel",)

    out2d = pl.pallas_call(
        _copy_kernel,
        out_shape=jax.ShapeDtypeStruct((R, C), orig_dtype),
        grid_spec=pltpu.PrefetchScalarGridSpec(
            num_scalar_prefetch=0,
            grid=grid,
            in_specs=[in_spec],
            out_specs=out_spec,
        ),
        input_output_aliases={0: 0},
        compiler_params=pltpu.CompilerParams(
            dimension_semantics=dim_sem,
            vmem_limit_bytes=_VMEM_LIMIT_BYTES,
        ),
    )(x2d)

    return out2d.reshape(orig_shape)


if __name__ == "__main__":
    key = jax.random.PRNGKey(0)
    # Small NCHW observation consistent with an image-based DrQ encoder input.
    obs = jax.random.normal(key, (2, 4, 16, 16), dtype=jnp.float32)
    obs_host = np.asarray(obs)  # reference copy for verification

    out = identity_pallas(obs)
    jax.block_until_ready(out)

    assert out.shape == obs.shape
    assert out.dtype == obs.dtype
    assert np.array_equal(np.asarray(out), obs_host)

    print("KERNEL_OK")
</pallas_src>

<mosaic_0001>
module attributes {stable_mosaic.version = 11 : i64} {
  func.func @_copy_kernel(%arg0: i32, %arg1: memref<1x2048xf32, #tpu.memory_space<vmem>>, %arg2: memref<1x2048xf32, #tpu.memory_space<vmem>>) attributes {dimension_semantics = [#tpu.dimension_semantics<arbitrary>], iteration_bounds = array<i64: 1>, scalar_prefetch = 0 : i64, scratch_operands = 0 : i64, tpu.core_type = #tpu.core_type<tc>, window_params = [{pipeline_mode = #tpu.pipeline_mode<synchronous>, transform_indices = @transform_0, window_bounds = array<i64: 1, 2048>}, {pipeline_mode = #tpu.pipeline_mode<synchronous>, transform_indices = @transform_1, window_bounds = array<i64: 1, 2048>}]} {
    %c0 = arith.constant 0 : index
    %c0_0 = arith.constant 0 : index
    %0 = vector.load %arg1[%c0, %c0_0] : memref<1x2048xf32, #tpu.memory_space<vmem>>, vector<1x2048xf32>
    %c0_1 = arith.constant 0 : index
    %c0_2 = arith.constant 0 : index
    %1 = vector.load %arg2[%c0_1, %c0_2] : memref<1x2048xf32, #tpu.memory_space<vmem>>, vector<1x2048xf32>
    tpu.vector_store %arg2[%c0_1, %c0_2], %0 {strides = array<i32>} : memref<1x2048xf32, #tpu.memory_space<vmem>>, vector<1x2048xf32>,
    return
  }
  func.func @transform_0(%arg0: i32) -> (i32, i32) {
    %c0_i32 = arith.constant 0 : i32
    %c0_i32_0 = arith.constant 0 : i32
    %c0_i32_1 = arith.constant 0 : i32
    return %c0_i32, %c0_i32_0 : i32, i32
  }
  func.func @transform_1(%arg0: i32) -> (i32, i32) {
    %c0_i32 = arith.constant 0 : i32
    %c0_i32_0 = arith.constant 0 : i32
    %c0_i32_1 = arith.constant 0 : i32
    return %c0_i32, %c0_i32_0 : i32, i32
  }
}

</mosaic_0001>

<llo_original>
// kernel: tpu_custom_call.1
$region0: #{tpu_custom_call.1}
  #allocation0 [shape = 'u32[]', space=smem, size = 0x4, offset = 0x4, fixed_abs, tag = 'smem constant byte address 0x4 - core index']
  #allocation1 [shape = 'u32[72,128]{1,0:T(1,128)}', space=vmem, size = 0x9000, scoped, tag = 'internal scratch']
  %s0 = inlined_call_operand.hbm [shape: f32[1,2048], index: 0, kind: input, shape index: {}, may-alias: {0,1}]
  %s1 = inlined_call_operand.hbm [shape: f32[1,2048], index: 1, kind: output, shape index: {}, may-alias: {0,1}]
  %s2 = sld [smem:[#allocation0]]
  $region18: #{tpu_custom_call.1} parent=0
    _
  %s4 = ssub.s32 1, %s2
  %s5 = scalar_select 0, %s4, %s2
  $region1: #{tpu_custom_call.1} parent=0
    #allocation2 [shape = 'u8[8192]{0}', space=vmem, size = 0x2000, scoped, tag = 'input window, operand 0, single buffered']
    #allocation3 [shape = 's32[1]{0}', space=sflag, size = 0x4, scoped, tag = 'scoped memory for tpu_custom_call.1']
    #allocation4 [shape = 's32[1]{0}', space=sflag, size = 0x4, scoped, tag = 'scoped memory for tpu_custom_call.1']
    #allocation5 [shape = 'u8[8192]{0}', space=vmem, size = 0x2000, scoped, tag = 'output window, operand 0, single buffered']
    %6 = vsyncpa [#allocation3], 0
    %7 = vsyncpa [#allocation4], 0
    // Predicated region
    $region2: #{tpu_custom_call.1} parent=1 // pred_check
      _
    $region3: #{tpu_custom_call.1} parent=1 // pred_check_branch
      %9 = sbr.rel (0) target = $region5
    $region4: #{tpu_custom_call.1} parent=1 // pred_region
      %11 = vsyncadd [#allocation3], 0
      %s13 = sshll.u32 %s0, 4
      %s14 = int_to_ptr.hbm [resolvable:$true] %s13
      %s15 = sshll.u32 [#allocation2], 4
      %s16 = int_to_ptr.vmem [resolvable:$true] %s15
      %18 = dma.hbm_to_vmem [thread:$0]  %s14, 256, %s16, [#allocation3]
    $region5: #{tpu_custom_call.1} parent=1 // pred_fallthru
      _
    // Predicated region
    $region6: #{tpu_custom_call.1} parent=1 // pred_check
      _
    $region7: #{tpu_custom_call.1} parent=1 // pred_check_branch
      %20 = sbr.rel (0) target = $region9
    $region8: #{tpu_custom_call.1} parent=1 // pred_region
      %22 = dma.done [#allocation3], 256
    $region9: #{tpu_custom_call.1} parent=1 // pred_fallthru
      _
    %v23 = vld [vmem:[#allocation2] sm:$0xff]
    %v24 = vld [vmem:[#allocation2 + $0x8] sm:$0xff]
    %25 = vst [vmem:[#allocation5] sm:$0xff] %v23
    %26 = vst [vmem:[#allocation5 + $0x8] sm:$0xff] %v24
    // Predicated region
    $region10: #{tpu_custom_call.1} parent=1 // pred_check
      _
    $region11: #{tpu_custom_call.1} parent=1 // pred_check_branch
      %28 = sbr.rel (0) target = $region13
    $region12: #{tpu_custom_call.1} parent=1 // pred_region
      %30 = vsyncadd [#allocation4], 0
      %s32 = sshll.u32 [#allocation5], 4
      %s33 = int_to_ptr.vmem [resolvable:$true] %s32
      %s34 = sshll.u32 %s1, 4
      %s35 = int_to_ptr.hbm [resolvable:$true] %s34
      %37 = dma.vmem_to_hbm [thread:$0]  %s33, 256, %s35, [#allocation4]
    $region13: #{tpu_custom_call.1} parent=1 // pred_fallthru
      _
    // Predicated region
    $region14: #{tpu_custom_call.1} parent=1 // pred_check
      _
    $region15: #{tpu_custom_call.1} parent=1 // pred_check_branch
      %39 = sbr.rel (0) target = $region17
    $region16: #{tpu_custom_call.1} parent=1 // pred_region
      %41 = dma.done [#allocation4], 256
    $region17: #{tpu_custom_call.1} parent=1 // pred_fallthru
      _
    %42 = vsyncpa [#allocation3], 1
    %43 = vsyncpa [#allocation4], 1

</llo_original>
